<compile_context>
chip_gen: v7x
topology: tpu7x:2x2x1
jax: 0.10.0
libtpu: 0.0.40
codegen_flags: <defaults>
</compile_context>

<pallas_src>
import functools

import jax
import jax.numpy as jnp
import numpy as np
from jax.experimental import pallas as pl
from jax.experimental.pallas import tpu as pltpu

LN_EPS = 1e-5


def _round_up(x, m):
    return (x + m - 1) // m * m


def _bitlinear_kernel(x_ref, w_ref, lnw_ref, lnb_ref, o_ref,
                      *, clip_lo, clip_hi):
    # x_ref:   (tm, n_in)    activation row tile (bf16, streamed)
    # w_ref:   (n_in, tn)    binarized +-1 weight slab (bf16, lane-dense)
    # lnw_ref: (1, n_in)     LayerNorm weight, pre-scaled by beta (= Qb/gamma * final_term)
    # lnb_ref: (1, n_in)     LayerNorm bias,   pre-scaled by beta
    # o_ref:   (tm, tn)      output tile
    x = x_ref[...].astype(jnp.float32)

    # --- LayerNorm over the feature axis (biased variance, eps=1e-5) ---------
    mean = jnp.mean(x, axis=-1, keepdims=True)
    xc = x - mean
    var = jnp.mean(xc * xc, axis=-1, keepdims=True)
    # Quantization scale Qb/gamma AND the output rescale final_term are both
    # folded into lnw/lnb on the host (net scale = beta).
    xn = xc * jax.lax.rsqrt(var + LN_EPS) * lnw_ref[...] + lnb_ref[...]

    # --- ABSMax quantize (cast=False): clip bounds are pre-scaled by final_term
    xq = jnp.clip(xn, clip_lo, clip_hi).astype(jnp.bfloat16)

    # --- 1-bit matmul on the MXU (bf16 x bf16 -> f32 acc); no epilogue mul ----
    o_ref[...] = jnp.dot(xq, w_ref[...],
                         preferred_element_type=jnp.float32).astype(o_ref.dtype)


def bitlinear_forward(x, w_bin, ln_w, ln_b, *, beta, gamma, bit=8, ep=1e-5,
                      tm=256, tn=1024, out_dtype=jnp.float32,
                      vmem_budget_bytes=48 << 20):
    """x: (..., n_in) -> (..., n_out). All heavy compute runs in the kernel."""
    n_in, n_out = w_bin.shape
    orig_shape = x.shape
    # Stream the activation in bf16 (halves the re-streamed x HBM traffic);
    # the kernel upcasts to f32 for the LayerNorm.
    xm = x.reshape(-1, n_in).astype(jnp.bfloat16)
    M = xm.shape[0]

    qb_max = float(2 ** (bit - 1))              # Qb = 128 for bit=8
    final_term = float(beta) * float(gamma) / qb_max
    # Fold Qb/gamma * final_term = beta into the LN affine; scale the clip
    # bounds by final_term (> 0) so clipping commutes with the fold.
    lnw_s = (ln_w.astype(jnp.float32) * float(beta)).reshape(1, n_in)
    lnb_s = (ln_b.astype(jnp.float32) * float(beta)).reshape(1, n_in)
    clip_lo = (-qb_max + float(ep)) * final_term
    clip_hi = (qb_max - float(ep)) * final_term

    # --- Tile selection ------------------------------------------------------
    out_bytes = jnp.dtype(out_dtype).itemsize
    tm = max(8, min(tm, _round_up(M, 8)))
    tn = max(128, min(tn, _round_up(n_out, 128)))

    def footprint(tm_, tn_):
        # Double-buffered VMEM footprint of the pipelined operands.
        return 2 * (tm_ * n_in * 2            # x tile, bf16
                    + n_in * tn_ * 2          # weight slab, bf16
                    + tm_ * tn_ * out_bytes   # output tile
                    + 2 * n_in * 4)           # ln weight + bias, f32

    while footprint(tm, tn) > vmem_budget_bytes and tn > 128:
        tn //= 2
    while footprint(tm, tn) > vmem_budget_bytes and tm > 128:
        tm //= 2
    # Leave the scoped-VMEM limit explicit (v5e default is only 16 MiB) but
    # never above v7x's 64 MiB physical VMEM.
    vmem_limit = int(min(max(footprint(tm, tn) + (8 << 20), 32 << 20), 64 << 20))

    # --- Row padding: any batch*seq works -------------------------------------
    M_pad = _round_up(M, tm)
    if M_pad != M:
        xm = jnp.pad(xm, ((0, M_pad - M), (0, 0)))

    # --- n_out padding: lane-dense multiple of tn (cdiv, no divisibility req) -
    n_out_pad = _round_up(n_out, tn)
    w_b = w_bin.astype(jnp.bfloat16)            # +-1 values are exact in bf16
    if n_out_pad != n_out:
        w_b = jnp.pad(w_b, ((0, 0), (0, n_out_pad - n_out)))

    kernel = functools.partial(_bitlinear_kernel,
                               clip_lo=clip_lo, clip_hi=clip_hi)

    out = pl.pallas_call(
        kernel,
        out_shape=jax.ShapeDtypeStruct((M_pad, n_out_pad), out_dtype),
        grid_spec=pltpu.PrefetchScalarGridSpec(
            num_scalar_prefetch=0,
            # n_out-tile axis OUTERMOST: each (n_in, tn) weight slab is DMA'd
            # once and reused across every row tile; only x tiles re-stream.
            grid=(n_out_pad // tn, M_pad // tm),
            in_specs=[
                pl.BlockSpec((tm, n_in), lambda j, i: (i, 0)),     # x row tile
                pl.BlockSpec((n_in, tn), lambda j, i: (0, j)),     # weight slab
                pl.BlockSpec((1, n_in), lambda j, i: (0, 0)),      # ln weight
                pl.BlockSpec((1, n_in), lambda j, i: (0, 0)),      # ln bias
            ],
            out_specs=pl.BlockSpec((tm, tn), lambda j, i: (i, j)),
        ),
        compiler_params=pltpu.CompilerParams(
            dimension_semantics=("parallel", "parallel"),
            vmem_limit_bytes=vmem_limit),
    )(xm, w_b, lnw_s, lnb_s)

    out = out[:M, :n_out]
    return out.reshape(*orig_shape[:-1], n_out)


def init_bitlinear_params(key, n_in, n_out):
    """Deterministic replica of BitLinear.weight_init()."""
    w0 = jax.random.normal(key, (n_in, n_out), dtype=jnp.float32)
    alpha = jnp.mean(w0)                    # mean
    beta = jnp.mean(jnp.abs(w0))            # get_beta: ||W||_1 / (n*m)
    gamma = jnp.max(jnp.abs(w0))            # get_gamma: ||W||_inf
    w_bin = jnp.where((w0 - alpha) > 0, 1.0, -1.0).astype(jnp.float32)
    ln_w = jnp.ones((n_in,), jnp.float32)   # nn.LayerNorm default weight
    ln_b = jnp.zeros((n_in,), jnp.float32)  # nn.LayerNorm default bias
    return w_bin, ln_w, ln_b, float(beta), float(gamma)


def bitlinear_reference(x, w_bin, ln_w, ln_b, *, beta, gamma, bit=8, ep=1e-5):
    """Pure-JAX f32 reference for correctness checking."""
    qb_max = float(2 ** (bit - 1))
    mean = jnp.mean(x, axis=-1, keepdims=True)
    var = jnp.mean((x - mean) ** 2, axis=-1, keepdims=True)
    xn = (x - mean) * jax.lax.rsqrt(var + LN_EPS) * ln_w + ln_b
    xq = jnp.clip(xn * (qb_max / gamma), -qb_max + ep, qb_max - ep)
    return (xq @ w_bin) * (beta * gamma / qb_max)


if __name__ == "__main__":
    n_in, n_out = 32, 64
    batch, seq = 2, 8
    ep = 1e-5
    bit = 8

    key = jax.random.PRNGKey(0)
    kw, kx = jax.random.split(key)

    w_bin, ln_w, ln_b, beta, gamma = init_bitlinear_params(kw, n_in, n_out)
    x = jax.random.normal(kx, (batch, seq, n_in), dtype=jnp.float32)

    y = bitlinear_forward(x, w_bin, ln_w, ln_b,
                          beta=beta, gamma=gamma, bit=bit, ep=ep)
    y = jax.block_until_ready(y)

    y_ref = bitlinear_reference(x, w_bin, ln_w, ln_b,
                                beta=beta, gamma=gamma, bit=bit, ep=ep)
    # Tolerance covers the bf16 streaming of x and the bf16 cast of the
    # quantized activations (the +-1 bf16 weight is exact; accumulation is f32).
    np.testing.assert_allclose(np.asarray(y), np.asarray(y_ref),
                               rtol=2e-2, atol=5e-2)

    print("KERNEL_OK")
</pallas_src>

<mosaic_0001>
module attributes {stable_mosaic.version = 11 : i64} {
  func.func @_bitlinear_kernel(%arg0: i32, %arg1: i32, %arg2: memref<16x32xbf16, #tpu.memory_space<vmem>>, %arg3: memref<32x128xbf16, #tpu.memory_space<vmem>>, %arg4: memref<1x32xf32, #tpu.memory_space<vmem>>, %arg5: memref<1x32xf32, #tpu.memory_space<vmem>>, %arg6: memref<16x128xf32, #tpu.memory_space<vmem>>) attributes {dimension_semantics = [#tpu.dimension_semantics<parallel>, #tpu.dimension_semantics<parallel>], iteration_bounds = array<i64: 1, 1>, scalar_prefetch = 0 : i64, scratch_operands = 0 : i64, tpu.core_type = #tpu.core_type<tc>, window_params = [{transform_indices = @transform_0, window_bounds = array<i64: 16, 32>}, {transform_indices = @transform_1, window_bounds = array<i64: 32, 128>}, {pipeline_mode = #tpu.pipeline_mode<synchronous>, transform_indices = @transform_2, window_bounds = array<i64: 1, 32>}, {pipeline_mode = #tpu.pipeline_mode<synchronous>, transform_indices = @transform_3, window_bounds = array<i64: 1, 32>}, {transform_indices = @transform_4, window_bounds = array<i64: 16, 128>}]} {
    %c0 = arith.constant 0 : index
    %c0_0 = arith.constant 0 : index
    %0 = vector.load %arg2[%c0, %c0_0] : memref<16x32xbf16, #tpu.memory_space<vmem>>, vector<16x32xbf16>
    %1 = arith.extf %0 : vector<16x32xbf16> to vector<16x32xf32>
    %cst = arith.constant dense<0.000000e+00> : vector<16xf32>
    %2 = vector.multi_reduction <add>, %1, %cst [1] : vector<16x32xf32> to vector<16xf32>
    %3 = vector.shape_cast %2 : vector<16xf32> to vector<16x1xf32>
    %cst_1 = arith.constant 3.200000e+01 : f32
    %4 = vector.broadcast %cst_1 : f32 to vector<16x1xf32>
    %5 = arith.divf %3, %4 : vector<16x1xf32>
    %6 = vector.broadcast %5 : vector<16x1xf32> to vector<16x32xf32>
    %7 = arith.subf %1, %6 : vector<16x32xf32>
    %8 = arith.mulf %7, %7 : vector<16x32xf32>
    %cst_2 = arith.constant dense<0.000000e+00> : vector<16xf32>
    %9 = vector.multi_reduction <add>, %8, %cst_2 [1] : vector<16x32xf32> to vector<16xf32>
    %10 = vector.shape_cast %9 : vector<16xf32> to vector<16x1xf32>
    %cst_3 = arith.constant 3.200000e+01 : f32
    %11 = vector.broadcast %cst_3 : f32 to vector<16x1xf32>
    %12 = arith.divf %10, %11 : vector<16x1xf32>
    %cst_4 = arith.constant 9.99999974E-6 : f32
    %13 = vector.broadcast %cst_4 : f32 to vector<16x1xf32>
    %14 = arith.addf %12, %13 : vector<16x1xf32>
    %15 = math.rsqrt %14 : vector<16x1xf32>
    %16 = vector.broadcast %15 : vector<16x1xf32> to vector<16x32xf32>
    %17 = arith.mulf %7, %16 : vector<16x32xf32>
    %c0_5 = arith.constant 0 : index
    %c0_6 = arith.constant 0 : index
    %18 = vector.load %arg4[%c0_5, %c0_6] : memref<1x32xf32, #tpu.memory_space<vmem>>, vector<1x32xf32>
    %19 = vector.broadcast %18 : vector<1x32xf32> to vector<16x32xf32>
    %20 = arith.mulf %17, %19 : vector<16x32xf32>
    %c0_7 = arith.constant 0 : index
    %c0_8 = arith.constant 0 : index
    %21 = vector.load %arg5[%c0_7, %c0_8] : memref<1x32xf32, #tpu.memory_space<vmem>>, vector<1x32xf32>
    %22 = vector.broadcast %21 : vector<1x32xf32> to vector<16x32xf32>
    %23 = arith.addf %20, %22 : vector<16x32xf32>
    %cst_9 = arith.constant -2.65116882 : f32
    %cst_10 = arith.constant 2.65116882 : f32
    %24 = vector.broadcast %cst_9 : f32 to vector<16x32xf32>
    %25 = arith.maximumf %24, %23 : vector<16x32xf32>
    %26 = vector.broadcast %cst_10 : f32 to vector<16x32xf32>
    %27 = arith.minimumf %26, %25 : vector<16x32xf32>
    %28 = arith.truncf %27 : vector<16x32xf32> to vector<16x32xbf16>
    %c0_11 = arith.constant 0 : index
    %c0_12 = arith.constant 0 : index
    %29 = vector.load %arg3[%c0_11, %c0_12] : memref<32x128xbf16, #tpu.memory_space<vmem>>, vector<32x128xbf16>
    %cst_13 = arith.constant dense<0.000000e+00> : vector<16x128xf32>
    %30 = tpu.matmul %28, %29, %cst_13 {dimension_numbers = #tpu.dot_dimension_numbers<[1], [0], [0], [1], [0, 0, 1, 1], [], []>} : vector<16x32xbf16>, vector<32x128xbf16>, vector<16x128xf32> -> vector<16x128xf32>
    %c0_14 = arith.constant 0 : index
    %c0_15 = arith.constant 0 : index
    %31 = vector.load %arg6[%c0_14, %c0_15] : memref<16x128xf32, #tpu.memory_space<vmem>>, vector<16x128xf32>
    tpu.vector_store %arg6[%c0_14, %c0_15], %30 {strides = array<i32>} : memref<16x128xf32, #tpu.memory_space<vmem>>, vector<16x128xf32>,
    return
  }
  func.func @transform_0(%arg0: i32, %arg1: i32) -> (i32, i32) {
    %c0_i32 = arith.constant 0 : i32
    %c0_i32_0 = arith.constant 0 : i32
    return %arg1, %c0_i32 : i32, i32
  }
  func.func @transform_1(%arg0: i32, %arg1: i32) -> (i32, i32) {
    %c0_i32 = arith.constant 0 : i32
    %c0_i32_0 = arith.constant 0 : i32
    return %c0_i32, %arg0 : i32, i32
  }
  func.func @transform_2(%arg0: i32, %arg1: i32) -> (i32, i32) {
    %c0_i32 = arith.constant 0 : i32
    %c0_i32_0 = arith.constant 0 : i32
    %c0_i32_1 = arith.constant 0 : i32
    return %c0_i32, %c0_i32_0 : i32, i32
  }
  func.func @transform_3(%arg0: i32, %arg1: i32) -> (i32, i32) {
    %c0_i32 = arith.constant 0 : i32
    %c0_i32_0 = arith.constant 0 : i32
    %c0_i32_1 = arith.constant 0 : i32
    return %c0_i32, %c0_i32_0 : i32, i32
  }
  func.func @transform_4(%arg0: i32, %arg1: i32) -> (i32, i32) {
    %c0_i32 = arith.constant 0 : i32
    return %arg1, %arg0 : i32, i32
  }
}

</mosaic_0001>

<llo_original>
// kernel: tpu_custom_call.1
$region0: #{tpu_custom_call.1}
  #allocation0 [shape = 'u32[]', space=smem, size = 0x4, offset = 0x4, fixed_abs, tag = 'smem constant byte address 0x4 - core index']
  #allocation1 [shape = 'u32[144,128]{1,0:T(1,128)}', space=vmem, size = 0x12000, scoped, tag = 'internal scratch']
  %s0 = inlined_call_operand.hbm [shape: bf16[16,32], index: 0, kind: input, shape index: {}]
  %s1 = inlined_call_operand.hbm [shape: bf16[32,128], index: 1, kind: input, shape index: {}]
  %s2 = inlined_call_operand.vmem [shape: f32[1,32], index: 2, kind: input, shape index: {}]
  %s3 = inlined_call_operand.vmem [shape: f32[1,32], index: 3, kind: input, shape index: {}]
  %s4 = inlined_call_operand.hbm [shape: f32[16,128], index: 4, kind: output, shape index: {}]
  %s5 = sld [smem:[#allocation0]]
  $region34: #{tpu_custom_call.1} parent=0
    _
  %s7 = ssub.s32 1, %s5
  %s8 = scalar_select 0, %s7, %s5
  $region1: #{tpu_custom_call.1} parent=0
    #allocation2 [shape = 'u8[4096]{0}', space=vmem, size = 0x1000, scoped, tag = 'input window, operand 0, single buffered']
    #allocation3 [shape = 's32[1]{0}', space=sflag, size = 0x4, scoped, tag = 'scoped memory for tpu_custom_call.1']
    #allocation4 [shape = 's32[1]{0}', space=sflag, size = 0x4, scoped, tag = 'scoped memory for tpu_custom_call.1']
    #allocation5 [shape = 'u8[8192]{0}', space=vmem, size = 0x2000, scoped, tag = 'input window, operand 1, single buffered']
    #allocation6 [shape = 's32[1]{0}', space=sflag, size = 0x4, scoped, tag = 'scoped memory for tpu_custom_call.1']
    #allocation7 [shape = 'u8[8192]{0}', space=vmem, size = 0x2000, scoped, tag = 'output window, operand 0, single buffered']
    %9 = vsyncpa [#allocation3], 0
    %10 = vsyncpa [#allocation6], 0
    %11 = vsyncpa [#allocation4], 0
    // Predicated region
    $region2: #{tpu_custom_call.1} parent=1 // pred_check
      _
    $region3: #{tpu_custom_call.1} parent=1 // pred_check_branch
      %13 = sbr.rel (0) target = $region5
    $region4: #{tpu_custom_call.1} parent=1 // pred_region
      %s15 = ssub.s32 128, 128
      %16 = vsyncadd [#allocation3], %s15
      %s17 = sshll.u32 [#allocation2], 4
      %s18 = int_to_ptr.vmem [resolvable:$true] %s17
      %23 = dma.hbm_to_vmem [thread:$0]  %s0, 128, %s18, [#allocation3], 64, 64, 4
    $region5: #{tpu_custom_call.1} parent=1 // pred_fallthru
      _
    // Predicated region
    $region6: #{tpu_custom_call.1} parent=1 // pred_check
      _
    $region7: #{tpu_custom_call.1} parent=1 // pred_check_branch
      %25 = sbr.rel (0) target = $region9
    $region8: #{tpu_custom_call.1} parent=1 // pred_region
      %s27 = ssub.s32 256, 256
      %28 = vsyncadd [#allocation6], %s27
      %s29 = sshll.u32 [#allocation5], 4
      %s30 = int_to_ptr.vmem [resolvable:$true] %s29
      %35 = dma.hbm_to_vmem [thread:$0]  %s1, 256, %s30, [#allocation6], 64, 64, 4
    $region9: #{tpu_custom_call.1} parent=1 // pred_fallthru
      _
    // Predicated region
    $region10: #{tpu_custom_call.1} parent=1 // pred_check
      _
    $region11: #{tpu_custom_call.1} parent=1 // pred_check_branch
      %37 = sbr.rel (0) target = $region13
    $region12: #{tpu_custom_call.1} parent=1 // pred_region
      _
    $region13: #{tpu_custom_call.1} parent=1 // pred_fallthru
      _
    // Predicated region
    $region14: #{tpu_custom_call.1} parent=1 // pred_check
      _
    $region15: #{tpu_custom_call.1} parent=1 // pred_check_branch
      %39 = sbr.rel (0) target = $region17
    $region16: #{tpu_custom_call.1} parent=1 // pred_region
      _
    $region17: #{tpu_custom_call.1} parent=1 // pred_fallthru
      _
    // Predicated region
    $region18: #{tpu_custom_call.1} parent=1 // pred_check
      _
    $region19: #{tpu_custom_call.1} parent=1 // pred_check_branch
      %41 = sbr.rel (0) target = $region21
    $region20: #{tpu_custom_call.1} parent=1 // pred_region
      %42 = dma.done [#allocation3], 128
    $region21: #{tpu_custom_call.1} parent=1 // pred_fallthru
      _
    // Predicated region
    $region22: #{tpu_custom_call.1} parent=1 // pred_check
      _
    $region23: #{tpu_custom_call.1} parent=1 // pred_check_branch
      %44 = sbr.rel (0) target = $region25
    $region24: #{tpu_custom_call.1} parent=1 // pred_region
      %45 = dma.done [#allocation6], 256
    $region25: #{tpu_custom_call.1} parent=1 // pred_fallthru
      _
    %v47 = vld [vmem:[#allocation2] sm:$0xf]
    %v48 = vld [vmem:[#allocation2 + $0x4] sm:$0xf]
    %v49 = vunpack.c.l.bf16 %v47
    %v50 = vunpack.c.l.bf16 %v48
    %vm51 = vcmask 261120
    %v52 = vsel %vm51, %v49, 0.0
    %53 = vadd.xlane.f32.xlu0 %v52
    %v54 = vpop.xlane.xlu0 %53
    %v55 = vsel %vm51, %v50, 0.0
    %56 = vadd.xlane.f32.xlu0 %v55
    %v57 = vpop.xlane.xlu0 %56
    %v58 = vrcp.pop 32.0
    %v59 = vmul.f32 %v54, %v58
    %v60 = vmul.f32 %v57, %v58
    %v61 = vsub.f32 %v49, %v59
    %v62 = vsub.f32 %v50, %v60
    %v63 = vmul.f32 %v61, %v61
    %v64 = vmul.f32 %v62, %v62
    %v65 = vsel %vm51, %v63, 0.0
    %66 = vadd.xlane.f32.xlu0 %v65
    %v67 = vpop.xlane.xlu0 %66
    %v68 = vsel %vm51, %v64, 0.0
    %69 = vadd.xlane.f32.xlu0 %v68
    %v70 = vpop.xlane.xlu0 %69
    %v71 = vmul.f32 %v67, %v58
    %v72 = vmul.f32 %v70, %v58
    %v73 = vadd.f32 %v71, 1e-05
    %v74 = vadd.f32 %v72, 1e-05
    %v75 = vrsqrt.pop %v73
    %v76 = vrsqrt.pop %v74
    %v77 = vmul.f32 %v61, %v75
    %v78 = vmul.f32 %v62, %v76
    %v79 = vld [vmem:[%s2] sm:$0x1]
    %v81 = vlaneseq
    %v82 = vshrl.u32 %v81, 7
    %v83 = vsub.s32 0, %v82
    %v84 = vrot.slane %v79, %v83
    %v86 = vmul.f32 %v77, %v84
    %v87 = vmul.f32 %v78, %v84
    %v88 = vld [vmem:[%s3] sm:$0x1]
    %v90 = vlaneseq
    %v91 = vshrl.u32 %v90, 7
    %v92 = vsub.s32 0, %v91
    %v93 = vrot.slane %v88, %v92
    %v95 = vadd.f32 %v86, %v93
    %v96 = vadd.f32 %v87, %v93
    %v97 = vmax.f32 %v95, -2.6511688
    %v98 = vmax.f32 %v96, -2.6511688
    %v99 = vmin.f32 %v97, 2.6511688
    %v100 = vmin.f32 %v98, 2.6511688
    %v101 = vpack.c.bf16 %v100, %v99
    %v102 = vld [vmem:[#allocation5] sm:$0xf]
    %v103 = vld [vmem:[#allocation5 + $0x4] sm:$0xf]
    %v104 = vld [vmem:[#allocation5 + $0x8] sm:$0xf]
    %v105 = vld [vmem:[#allocation5 + $0xc] sm:$0xf]
    %v110 = vunpack.c.l.b16 %v102
    %v111 = vunpack.c.l.b16 %v103
    %v112 = vunpack.c.l.b16 %v104
    %v113 = vunpack.c.l.b16 %v105
    %v114 = vpack.c.b16 %v111, %v110
    %v115 = vpack.c.b16 %v113, %v112
    %v119 = vsel %vm51, %v101, 0
    %121 = vmatprep.subr.bf16.mxu0 0
    %122 = vmatpush1.bf16.msra.mxu0 %v114
    %123 = vmatprep.subr.bf16.mxu0 0
    %124 = vmatpush1.bf16.msra.mxu0 %v115
    %125 = vmatprep.subr.bf16.mxu0 0
    %126 = vmatpush1.bf16.msra.mxu0 0
    %127 = vmatprep.subr.bf16.mxu0 0
    %128 = vmatpush1.bf16.msra.mxu0 0
    %129 = vmatprep.subr.bf16.mxu0 0
    %130 = vmatpush1.bf16.msra.mxu0 0
    %131 = vmatprep.subr.bf16.mxu0 0
    %132 = vmatpush1.bf16.msra.mxu0 0
    %133 = vmatprep.subr.bf16.mxu0 0
    %134 = vmatpush1.bf16.msra.mxu0 0
    %135 = vmatprep.subr.bf16.mxu0 0
    %136 = vmatpush1.bf16.msra.mxu0 0
    %137 = vmatprep.subr.bf16.mxu0 0
    %138 = vmatpush1.bf16.msra.mxu0 0
    %139 = vmatprep.subr.bf16.mxu0 0
    %140 = vmatpush1.bf16.msra.mxu0 0
    %141 = vmatprep.subr.bf16.mxu0 0
    %142 = vmatpush1.bf16.msra.mxu0 0
    %143 = vmatprep.subr.bf16.mxu0 0
    %144 = vmatpush1.bf16.msra.mxu0 0
    %145 = vmatprep.subr.bf16.mxu0 0
    %146 = vmatpush1.bf16.msra.mxu0 0
    %147 = vmatprep.subr.bf16.mxu0 0
    %148 = vmatpush1.bf16.msra.mxu0 0
    %149 = vmatprep.subr.bf16.mxu0 0
    %150 = vmatpush1.bf16.msra.mxu0 0
    %151 = vmatprep.subr.bf16.mxu0 0
    %152 = vmatpush1.bf16.msra.mxu0 0
    %153 = vmatprep.mubr.bf16.mxu0 0
    %154 = vmatmul.mubr.bf16.gmra.mrb[0].mxu0 %v119
    %v155 = vpop.f32.mrb[0].mxu0
    %v156 = vadd.f32 0.0, %v155
    %v157 = vpop.f32.mrb[0].mxu0
    %v158 = vpop.f32.mrb[0].mxu0
    %v159 = vadd.f32 0.0, %v158
    %v160 = vpop.f32.mrb[0].mxu0
    %161 = vdwg.mxu0
    %162 = vst [vmem:[#allocation7] sm:$0xff] %v156
    %163 = vst [vmem:[#allocation7 + $0x8] sm:$0xff] %v159
    // Predicated region
    $region26: #{tpu_custom_call.1} parent=1 // pred_check
      _
    $region27: #{tpu_custom_call.1} parent=1 // pred_check_branch
      %165 = sbr.rel (0) target = $region29
    $region28: #{tpu_custom_call.1} parent=1 // pred_region
      %s167 = ssub.s32 256, 256
      %168 = vsyncadd [#allocation4], %s167
      %s169 = sshll.u32 [#allocation7], 4
      %s170 = int_to_ptr.vmem [resolvable:$true] %s169
      %175 = dma.vmem_to_hbm [thread:$0]  %s170, 256, %s4, [#allocation4], 128, 128, 8
    $region29: #{tpu_custom_call.1} parent=1 // pred_fallthru
      _
    // Predicated region
    $region30: #{tpu_custom_call.1} parent=1 // pred_check
      _
    $region31: #{tpu_custom_call.1} parent=1 // pred_check_branch
      %177 = sbr.rel (0) target = $region33
    $region32: #{tpu_custom_call.1} parent=1 // pred_region
      %178 = dma.done [#allocation4], 256
    $region33: #{tpu_custom_call.1} parent=1 // pred_fallthru
      _
    %179 = vsyncpa [#allocation3], 1
    %180 = vsyncpa [#allocation6], 1
    %181 = vsyncpa [#allocation4], 1

</llo_original>
